<compile_context>
chip_gen: v6e
topology: v6e:2x2x1
jax: 0.10.0
libtpu: 0.0.40
codegen_flags: <defaults>
</compile_context>

<pallas_src>
import jax
import jax.numpy as jnp
from jax.experimental import pallas as pl
from jax.experimental.pallas import tpu as pltpu

NUM_GROUPS = 32
EPS = 1e-5                              # torch.nn.GroupNorm default
VMEM_LIMIT_BYTES = 48 * 1024 * 1024     # headroom under v7x's 64 MiB per TensorCore


# ---------------------------------------------------------------------------
# Optional single-buffering of grid-invariant operands (weights)
# ---------------------------------------------------------------------------
_WEIGHT_PIPELINE_MODE = None            # lazily resolved: (pl.Buffered(1),) or (None,)


def _weight_pipeline_mode():
    """Return pl.Buffered(1) if this JAX build supports single-buffered
    BlockSpecs (halves weight VMEM), otherwise None (default double-buffering)."""
    global _WEIGHT_PIPELINE_MODE
    if _WEIGHT_PIPELINE_MODE is not None:
        return _WEIGHT_PIPELINE_MODE[0]

    def _probe(x_ref, o_ref):
        o_ref[...] = x_ref[...] + 1.0

    try:
        mode = pl.Buffered(1)
        out = pl.pallas_call(
            _probe,
            out_shape=jax.ShapeDtypeStruct((8, 128), jnp.float32),
            grid=(2,),
            in_specs=[pl.BlockSpec((8, 128), lambda i: (0, 0), pipeline_mode=mode)],
            out_specs=pl.BlockSpec((8, 128), lambda i: (0, 0)),
        )(jnp.zeros((8, 128), jnp.float32))
        out = jax.block_until_ready(out)
        if not bool(jnp.all(out == 1.0)):
            raise RuntimeError("pl.Buffered(1) probe produced wrong values")
        _WEIGHT_PIPELINE_MODE = (mode,)
    except Exception:  # fall back to default double-buffering
        _WEIGHT_PIPELINE_MODE = (None,)
    return _WEIGHT_PIPELINE_MODE[0]


# ---------------------------------------------------------------------------
# Kernel 1: GroupNorm statistics of x (row-tiled reduction over the grid)
# ---------------------------------------------------------------------------
def _gn_stats_kernel(x_ref, s_ref, q_ref):
    h = pl.program_id(1)

    @pl.when(h == 0)
    def _():
        s_ref[...] = jnp.zeros_like(s_ref)
        q_ref[...] = jnp.zeros_like(q_ref)

    th, w, c = x_ref.shape[1], x_ref.shape[2], x_ref.shape[3]
    x2 = x_ref[0].reshape(th * w, c).astype(jnp.float32)
    # Exact f32 accumulation; both reductions share the single x2 load
    # (variance is formed once per image in the wrapper).
    s_ref[0] += jnp.sum(x2, axis=0, keepdims=True)
    q_ref[0] += jnp.sum(x2 * x2, axis=0, keepdims=True)


def _gn_stats(x, row_tile):
    N, H, W, C = x.shape
    nh = H // row_tile
    s, q = pl.pallas_call(
        _gn_stats_kernel,
        out_shape=(jax.ShapeDtypeStruct((N, 1, C), jnp.float32),
                   jax.ShapeDtypeStruct((N, 1, C), jnp.float32)),
        grid=(N, nh),
        in_specs=[pl.BlockSpec((1, row_tile, W, C), lambda n, h: (n, h, 0, 0))],
        out_specs=(pl.BlockSpec((1, 1, C), lambda n, h: (n, 0, 0)),
                   pl.BlockSpec((1, 1, C), lambda n, h: (n, 0, 0))),
        compiler_params=pltpu.CompilerParams(
            dimension_semantics=("parallel", "arbitrary"),
            vmem_limit_bytes=VMEM_LIMIT_BYTES),
    )(x)
    return s[:, 0, :], q[:, 0, :]


def _gn_scale_shift(s, q, gamma, beta, hw, num_groups=NUM_GROUPS, eps=EPS):
    """Fold GroupNorm statistics + affine into per-image per-channel scale/shift."""
    N, C = s.shape
    gs = C // num_groups
    cnt = float(hw * gs)
    mean_g = s.reshape(N, num_groups, gs).sum(-1) / cnt
    meansq_g = q.reshape(N, num_groups, gs).sum(-1) / cnt
    var_g = jnp.maximum(meansq_g - mean_g * mean_g, 0.0)   # f32 sums; fine unless |mean| >> std
    inv_g = jax.lax.rsqrt(var_g + eps)
    mean_c = jnp.repeat(mean_g, gs, axis=1)
    inv_c = jnp.repeat(inv_g, gs, axis=1)
    scale = gamma[None, :].astype(jnp.float32) * inv_c
    shift = beta[None, :].astype(jnp.float32) - mean_c * scale
    return scale.reshape(N, 1, C), shift.reshape(N, 1, C)


# ---------------------------------------------------------------------------
# Kernel 2/3: (GN-affine -> SiLU -> Conv3x3) [+ shortcut] on row tiles with halo
# ---------------------------------------------------------------------------
def _make_nac_kernel(TH, W, Cin, Cout, emit_stats, shortcut_mode):
    def kernel(*refs):
        scale_ref, shift_ref, xt_ref, xm_ref, xb_ref, w_ref, b_ref = refs[:7]
        pos = 7
        r_ref = ws_ref = bs_ref = None
        if shortcut_mode is not None:
            r_ref = refs[pos]; pos += 1
        if shortcut_mode == "proj":
            ws_ref, bs_ref = refs[pos], refs[pos + 1]; pos += 2
        o_ref = refs[pos]; pos += 1
        if emit_stats:
            osum_ref, osq_ref = refs[pos], refs[pos + 1]; pos += 2
        pad_ref, col_ref = refs[pos], refs[pos + 1]

        h_idx = pl.program_id(1)
        last_h = pl.num_programs(1) - 1

        scale = scale_ref[0]                     # (1, Cin) f32
        shift = shift_ref[0]                     # (1, Cin) f32

        def norm_act(v):                         # v: (rows, Cin) -> (rows, Cin) f32
            y = v * scale + shift                # promotes bf16 inputs to f32
            return y * jax.nn.sigmoid(y)         # SiLU (f32)

        # --- normalized + activated rows into the zero-padded bf16 scratch ---
        a_main = norm_act(xm_ref[0].reshape(TH * W, Cin))
        pad_ref[1:TH + 1, 1:W + 1, :] = a_main.reshape(TH, W, Cin).astype(jnp.bfloat16)

        # halo rows: real data for interior tiles, zeros at the image border
        top_keep = jnp.where(h_idx > 0, 1.0, 0.0)
        a_top = norm_act(xt_ref[0].reshape(W, Cin)) * top_keep
        pad_ref[0:1, 1:W + 1, :] = a_top.reshape(1, W, Cin).astype(jnp.bfloat16)

        bot_keep = jnp.where(h_idx < last_h, 1.0, 0.0)
        a_bot = norm_act(xb_ref[0].reshape(W, Cin)) * bot_keep
        pad_ref[TH + 1:TH + 2, 1:W + 1, :] = a_bot.reshape(1, W, Cin).astype(jnp.bfloat16)

        # only the 1-px left/right padding columns need zeros (cheap, and robust
        # to any grid execution order / multi-core split -- no "zeroed once" state).
        zcol = jnp.zeros((TH + 2, 1, Cin), jnp.bfloat16)
        pad_ref[:, 0:1, :] = zcol
        pad_ref[:, W + 1:W + 2, :] = zcol

        # --- im2col slab (bf16): the 9 shifted windows laid side by side ---
        for dh in range(3):
            for dw in range(3):
                t = dh * 3 + dw
                col_ref[:, t * Cin:(t + 1) * Cin] = (
                    pad_ref[dh:dh + TH, dw:dw + W, :].reshape(TH * W, Cin))

        # --- single large-K MXU matmul: (TH*W, 9*Cin) @ (9*Cin, Cout), f32 acc ---
        acc = jnp.dot(col_ref[...], w_ref[...],
                      preferred_element_type=jnp.float32) + b_ref[...]

        # --- residual shortcut ---
        if shortcut_mode == "identity":
            acc = acc + r_ref[0].reshape(TH * W, r_ref.shape[-1]).astype(jnp.float32)
        elif shortcut_mode == "proj":
            r2 = r_ref[0].reshape(TH * W, r_ref.shape[-1]).astype(jnp.bfloat16)
            acc = acc + jnp.dot(r2, ws_ref[...],
                                preferred_element_type=jnp.float32) + bs_ref[...]

        o_ref[0] = acc.reshape(TH, W, Cout).astype(o_ref.dtype)

        # --- fused GroupNorm statistics of this op's output (feeds the next GN) ---
        if emit_stats:
            @pl.when(h_idx == 0)
            def _():
                osum_ref[...] = jnp.zeros_like(osum_ref)
                osq_ref[...] = jnp.zeros_like(osq_ref)
            osum_ref[0] += jnp.sum(acc, axis=0, keepdims=True)
            osq_ref[0] += jnp.sum(acc * acc, axis=0, keepdims=True)

    return kernel


def _nac(inp, scale, shift, w_slab, b, row_tile, Cout, *, emit_stats,
         shortcut=None, out_dtype=jnp.float32):
    """Norm-act-conv3x3 [+ shortcut] on row tiles with a 1-row halo."""
    N, H, W, Cin = inp.shape
    TH = row_tile
    nh = H // TH
    wmode = _weight_pipeline_mode()

    def const_spec(shape):
        nd = len(shape)
        if wmode is not None:
            return pl.BlockSpec(shape, lambda n, h, _nd=nd: (0,) * _nd,
                                pipeline_mode=wmode)
        return pl.BlockSpec(shape, lambda n, h, _nd=nd: (0,) * _nd)

    in_specs = [
        pl.BlockSpec((1, 1, Cin), lambda n, h: (n, 0, 0)),                      # scale
        pl.BlockSpec((1, 1, Cin), lambda n, h: (n, 0, 0)),                      # shift
        pl.BlockSpec((1, 1, W, Cin),                                            # top halo row
                     lambda n, h: (n, jnp.maximum(h * TH - 1, 0), 0, 0)),
        pl.BlockSpec((1, TH, W, Cin), lambda n, h: (n, h, 0, 0)),               # main rows
        pl.BlockSpec((1, 1, W, Cin),                                            # bottom halo row
                     lambda n, h: (n, jnp.minimum(h * TH + TH, H - 1), 0, 0)),
        const_spec((9 * Cin, Cout)),                                            # conv weights (bf16)
        const_spec((1, Cout)),                                                  # conv bias
    ]
    args = [scale, shift, inp, inp, inp, w_slab, b]

    shortcut_mode = None
    if shortcut is not None:
        shortcut_mode, res, ws, bs = shortcut
        in_specs.append(pl.BlockSpec((1, TH, W, res.shape[-1]),
                                     lambda n, h: (n, h, 0, 0)))
        args.append(res)
        if shortcut_mode == "proj":
            in_specs += [const_spec((res.shape[-1], Cout)), const_spec((1, Cout))]
            args += [ws, bs]

    out_shape = [jax.ShapeDtypeStruct((N, H, W, Cout), out_dtype)]
    out_specs = [pl.BlockSpec((1, TH, W, Cout), lambda n, h: (n, h, 0, 0))]
    if emit_stats:
        out_shape += [jax.ShapeDtypeStruct((N, 1, Cout), jnp.float32)] * 2
        out_specs += [pl.BlockSpec((1, 1, Cout), lambda n, h: (n, 0, 0))] * 2

    kernel = _make_nac_kernel(TH, W, Cin, Cout, emit_stats, shortcut_mode)

    outs = pl.pallas_call(
        kernel,
        out_shape=tuple(out_shape),
        grid=(N, nh),
        in_specs=in_specs,
        out_specs=tuple(out_specs),
        scratch_shapes=[
            pltpu.VMEM((TH + 2, W + 2, Cin), jnp.bfloat16),  # zero-padded activation (bf16)
            pltpu.VMEM((TH * W, 9 * Cin), jnp.bfloat16),     # im2col slab (bf16)
        ],
        compiler_params=pltpu.CompilerParams(
            # batch axis is parallel (v7x megacore); the row-tile axis is also
            # parallel unless this pass accumulates cross-tile GN statistics.
            dimension_semantics=("parallel",
                                 "arbitrary" if emit_stats else "parallel"),
            vmem_limit_bytes=VMEM_LIMIT_BYTES),
    )(*args)

    if emit_stats:
        out, s, q = outs
        return out, s[:, 0, :], q[:, 0, :]
    return outs[0]


# ---------------------------------------------------------------------------
# Wrapper: full ResnetBlock forward
# ---------------------------------------------------------------------------
def _pick_row_tile(H, W, Cin, Cout, budget_bytes=8 << 20):
    """Largest divisor of H whose per-tile buffers fit the VMEM budget."""
    def tile_bytes(th):
        rows = th * W
        return (rows * 9 * Cin * 2                # im2col slab (bf16)
                + (th + 2) * (W + 2) * Cin * 2    # padded activation scratch (bf16)
                + 2 * rows * (Cin + Cout) * 4)    # double-buffered in/out tiles (f32 worst case)
    best = 1
    for th in range(1, H + 1):
        if H % th == 0 and tile_bytes(th) <= budget_bytes:
            best = th
    return best


def resnet_block_forward(x_nchw, params, row_tile=None):
    """x_nchw: (N, Cin, H, W) float32; params use PyTorch layouts."""
    N, Cin, H, W = x_nchw.shape
    Cout = params["w1"].shape[0]
    x = jnp.transpose(x_nchw, (0, 2, 3, 1)).astype(jnp.float32)      # NHWC

    TH = row_tile if row_tile is not None else _pick_row_tile(H, W, max(Cin, Cout), Cout)
    assert H % TH == 0, f"row_tile {TH} must divide H={H}"

    # Conv weights OIHW -> (kh*kw*Cin, Cout) matmul slabs, bf16 for the MXU.
    w1 = jnp.transpose(params["w1"], (2, 3, 1, 0)).reshape(9 * Cin, Cout).astype(jnp.bfloat16)
    w2 = jnp.transpose(params["w2"], (2, 3, 1, 0)).reshape(9 * Cout, Cout).astype(jnp.bfloat16)
    b1 = params["b1"].reshape(1, Cout).astype(jnp.float32)
    b2 = params["b2"].reshape(1, Cout).astype(jnp.float32)

    # 1) GroupNorm-1 statistics of x (row-tiled Pallas reduction).
    s1, q1 = _gn_stats(x, TH)
    scale1, shift1 = _gn_scale_shift(s1, q1, params["g1"], params["be1"], H * W)

    # 2) GN1-affine + SiLU + conv1 -> h1 (bf16 intermediate, halves HBM traffic);
    #    GroupNorm-2 stats of h1 accumulated in f32 in the same pass.
    h1, s2, q2 = _nac(x, scale1, shift1, w1, b1, TH, Cout, emit_stats=True,
                      out_dtype=jnp.bfloat16)
    scale2, shift2 = _gn_scale_shift(s2, q2, params["g2"], params["be2"], H * W)

    # 3) GN2-affine + SiLU + conv2 + residual shortcut (f32 output).
    if Cin != Cout:
        ws = jnp.transpose(params["ws"][:, :, 0, 0], (1, 0)).astype(jnp.bfloat16)
        bs = params["bs"].reshape(1, Cout).astype(jnp.float32)
        out = _nac(h1, scale2, shift2, w2, b2, TH, Cout, emit_stats=False,
                   shortcut=("proj", x, ws, bs))
    else:
        # identity shortcut: plain add inside the kernel (no 1x1 matmul, no weight DMA)
        out = _nac(h1, scale2, shift2, w2, b2, TH, Cout, emit_stats=False,
                   shortcut=("identity", x, None, None))

    return jnp.transpose(out, (0, 3, 1, 2))                          # back to NCHW


# ---------------------------------------------------------------------------
# Pure-JAX reference (mirrors the PyTorch ResnetBlock exactly)
# ---------------------------------------------------------------------------
def ref_resnet_block(x, p):
    def gn(x, gamma, beta):
        N, C, H, W = x.shape
        xg = x.reshape(N, NUM_GROUPS, C // NUM_GROUPS, H, W)
        mean = jnp.mean(xg, axis=(2, 3, 4), keepdims=True)
        var = jnp.mean((xg - mean) ** 2, axis=(2, 3, 4), keepdims=True)
        xn = ((xg - mean) * jax.lax.rsqrt(var + EPS)).reshape(N, C, H, W)
        return xn * gamma[None, :, None, None] + beta[None, :, None, None]

    def conv(x, w, b, pad):
        y = jax.lax.conv_general_dilated(
            x, w, window_strides=(1, 1), padding=[(pad, pad), (pad, pad)],
            dimension_numbers=("NCHW", "OIHW", "NCHW"),
            precision=jax.lax.Precision.HIGHEST)
        return y + b[None, :, None, None]

    h = conv(jax.nn.silu(gn(x, p["g1"], p["be1"])), p["w1"], p["b1"], 1)
    h = conv(jax.nn.silu(gn(h, p["g2"], p["be2"])), p["w2"], p["b2"], 1)
    sc = conv(x, p["ws"], p["bs"], 0) if "ws" in p else x
    return h + sc


# ---------------------------------------------------------------------------
if __name__ == "__main__":
    # GroupNorm(32, C) requires C % 32 == 0, so the smallest sensible channel
    # counts are 64 (identity shortcut) and 64 -> 128 (1x1 projection shortcut).
    N, H, W = 2, 16, 16
    ROW_TILE = 8          # 2 row tiles per image -> exercises the halo path

    key = jax.random.PRNGKey(0)

    def make_params(k, cin, cout):
        ks = jax.random.split(k, 10)
        p = {
            "g1": (1.0 + 0.1 * jax.random.normal(ks[0], (cin,))).astype(jnp.float32),
            "be1": (0.1 * jax.random.normal(ks[1], (cin,))).astype(jnp.float32),
            "w1": (0.1 * jax.random.normal(ks[2], (cout, cin, 3, 3))).astype(jnp.float32),
            "b1": (0.1 * jax.random.normal(ks[3], (cout,))).astype(jnp.float32),
            "g2": (1.0 + 0.1 * jax.random.normal(ks[4], (cout,))).astype(jnp.float32),
            "be2": (0.1 * jax.random.normal(ks[5], (cout,))).astype(jnp.float32),
            "w2": (0.1 * jax.random.normal(ks[6], (cout, cout, 3, 3))).astype(jnp.float32),
            "b2": (0.1 * jax.random.normal(ks[7], (cout,))).astype(jnp.float32),
        }
        if cin != cout:
            p["ws"] = (0.1 * jax.random.normal(ks[8], (cout, cin, 1, 1))).astype(jnp.float32)
            p["bs"] = (0.1 * jax.random.normal(ks[9], (cout,))).astype(jnp.float32)
        return p

    configs = {"identity-shortcut": (64, 64), "projection-shortcut": (64, 128)}
    kp, kx = jax.random.split(key)
    for name, (cin, cout) in configs.items():
        kp, k1 = jax.random.split(kp)
        kx, k2 = jax.random.split(kx)
        params = make_params(k1, cin, cout)
        x = jax.random.normal(k2, (N, cin, H, W), jnp.float32)

        y = jax.block_until_ready(resnet_block_forward(x, params, row_tile=ROW_TILE))
        y_ref = ref_resnet_block(x, params)

        max_err = float(jnp.max(jnp.abs(y - y_ref)))
        assert y.shape == y_ref.shape, f"{name}: shape {y.shape} vs {y_ref.shape}"
        # bf16 MXU operands + bf16 h1 intermediate vs f32 HIGHEST-precision reference
        # -> loose elementwise tolerance, tight relative Frobenius error.
        rel_fro = float(jnp.linalg.norm((y - y_ref).ravel())
                        / (jnp.linalg.norm(y_ref.ravel()) + 1e-12))
        assert jnp.allclose(y, y_ref, atol=1.5e-1, rtol=5e-2), f"{name}: max_err={max_err}"
        assert rel_fro < 2e-2, f"{name}: rel_fro={rel_fro}"

    print("KERNEL_OK")
</pallas_src>

<mosaic_0001>
module attributes {stable_mosaic.version = 11 : i64} {
  func.func @_gn_stats_kernel(%arg0: i32, %arg1: i32, %arg2: memref<1x8x16x64xf32, #tpu.memory_space<vmem>>, %arg3: memref<1x1x64xf32, #tpu.memory_space<vmem>>, %arg4: memref<1x1x64xf32, #tpu.memory_space<vmem>>) attributes {dimension_semantics = [#tpu.dimension_semantics<parallel>, #tpu.dimension_semantics<arbitrary>], iteration_bounds = array<i64: 2, 2>, scalar_prefetch = 0 : i64, scratch_operands = 0 : i64, tpu.core_type = #tpu.core_type<tc>, window_params = [{transform_indices = @transform_0, window_bounds = array<i64: 1, 8, 16, 64>}, {transform_indices = @transform_1, window_bounds = array<i64: 1, 1, 64>}, {transform_indices = @transform_2, window_bounds = array<i64: 1, 1, 64>}]} {
    %c0_i32 = arith.constant 0 : i32
    %0 = arith.cmpi eq, %arg1, %c0_i32 : i32
    %1 = arith.extui %0 : i1 to i32
    %c0_i32_0 = arith.constant 0 : i32
    %2 = arith.cmpi ne, %1, %c0_i32_0 : i32
    scf.if %2 {
      %cst_17 = arith.constant 0.000000e+00 : f32
      %23 = vector.broadcast %cst_17 : f32 to vector<1x1x64xf32>
      %c0_18 = arith.constant 0 : index
      %c0_19 = arith.constant 0 : index
      %c0_20 = arith.constant 0 : index
      %24 = vector.load %arg3[%c0_18, %c0_19, %c0_20] : memref<1x1x64xf32, #tpu.memory_space<vmem>>, vector<1x1x64xf32>
      tpu.vector_store %arg3[%c0_18, %c0_19, %c0_20], %23 {strides = array<i32>} : memref<1x1x64xf32, #tpu.memory_space<vmem>>, vector<1x1x64xf32>,
      %cst_21 = arith.constant 0.000000e+00 : f32
      %25 = vector.broadcast %cst_21 : f32 to vector<1x1x64xf32>
      %c0_22 = arith.constant 0 : index
      %c0_23 = arith.constant 0 : index
      %c0_24 = arith.constant 0 : index
      %26 = vector.load %arg4[%c0_22, %c0_23, %c0_24] : memref<1x1x64xf32, #tpu.memory_space<vmem>>, vector<1x1x64xf32>
      tpu.vector_store %arg4[%c0_22, %c0_23, %c0_24], %25 {strides = array<i32>} : memref<1x1x64xf32, #tpu.memory_space<vmem>>, vector<1x1x64xf32>,
    } else {
    }
    %c0 = arith.constant 0 : index
    %c0_1 = arith.constant 0 : index
    %c0_2 = arith.constant 0 : index
    %c0_3 = arith.constant 0 : index
    %3 = vector.load %arg2[%c0, %c0_1, %c0_2, %c0_3] : memref<1x8x16x64xf32, #tpu.memory_space<vmem>>, vector<1x8x16x64xf32>
    %4 = vector.shape_cast %3 : vector<1x8x16x64xf32> to vector<8x16x64xf32>
    %5 = vector.shape_cast %4 : vector<8x16x64xf32> to vector<128x64xf32>
    %c0_4 = arith.constant 0 : index
    %c0_5 = arith.constant 0 : index
    %c0_6 = arith.constant 0 : index
    %6 = vector.load %arg3[%c0_4, %c0_5, %c0_6] : memref<1x1x64xf32, #tpu.memory_space<vmem>>, vector<1x1x64xf32>
    %7 = vector.shape_cast %6 : vector<1x1x64xf32> to vector<1x64xf32>
    %cst = arith.constant dense<0.000000e+00> : vector<64xf32>
    %8 = vector.multi_reduction <add>, %5, %cst [0] : vector<128x64xf32> to vector<64xf32>
    %9 = vector.shape_cast %8 : vector<64xf32> to vector<1x64xf32>
    %10 = arith.addf %7, %9 : vector<1x64xf32>
    %c0_7 = arith.constant 0 : index
    %c0_8 = arith.constant 0 : index
    %c0_9 = arith.constant 0 : index
    %11 = vector.load %arg3[%c0_7, %c0_8, %c0_9] : memref<1x1x64xf32, #tpu.memory_space<vmem>>, vector<1x1x64xf32>
    %12 = vector.shape_cast %11 : vector<1x1x64xf32> to vector<1x64xf32>
    %13 = vector.shape_cast %10 : vector<1x64xf32> to vector<1x1x64xf32>
    tpu.vector_store %arg3[%c0_7, %c0_8, %c0_9], %13 {strides = array<i32>} : memref<1x1x64xf32, #tpu.memory_space<vmem>>, vector<1x1x64xf32>,
    %c0_10 = arith.constant 0 : index
    %c0_11 = arith.constant 0 : index
    %c0_12 = arith.constant 0 : index
    %14 = vector.load %arg4[%c0_10, %c0_11, %c0_12] : memref<1x1x64xf32, #tpu.memory_space<vmem>>, vector<1x1x64xf32>
    %15 = vector.shape_cast %14 : vector<1x1x64xf32> to vector<1x64xf32>
    %16 = arith.mulf %5, %5 : vector<128x64xf32>
    %cst_13 = arith.constant dense<0.000000e+00> : vector<64xf32>
    %17 = vector.multi_reduction <add>, %16, %cst_13 [0] : vector<128x64xf32> to vector<64xf32>
    %18 = vector.shape_cast %17 : vector<64xf32> to vector<1x64xf32>
    %19 = arith.addf %15, %18 : vector<1x64xf32>
    %c0_14 = arith.constant 0 : index
    %c0_15 = arith.constant 0 : index
    %c0_16 = arith.constant 0 : index
    %20 = vector.load %arg4[%c0_14, %c0_15, %c0_16] : memref<1x1x64xf32, #tpu.memory_space<vmem>>, vector<1x1x64xf32>
    %21 = vector.shape_cast %20 : vector<1x1x64xf32> to vector<1x64xf32>
    %22 = vector.shape_cast %19 : vector<1x64xf32> to vector<1x1x64xf32>
    tpu.vector_store %arg4[%c0_14, %c0_15, %c0_16], %22 {strides = array<i32>} : memref<1x1x64xf32, #tpu.memory_space<vmem>>, vector<1x1x64xf32>,
    return
  }
  func.func @transform_0(%arg0: i32, %arg1: i32) -> (i32, i32, i32, i32) {
    %c0_i32 = arith.constant 0 : i32
    %c0_i32_0 = arith.constant 0 : i32
    %c0_i32_1 = arith.constant 0 : i32
    return %arg0, %arg1, %c0_i32, %c0_i32_0 : i32, i32, i32, i32
  }
  func.func @transform_1(%arg0: i32, %arg1: i32) -> (i32, i32, i32) {
    %c0_i32 = arith.constant 0 : i32
    %c0_i32_0 = arith.constant 0 : i32
    %c0_i32_1 = arith.constant 0 : i32
    return %arg0, %c0_i32, %c0_i32_0 : i32, i32, i32
  }
  func.func @transform_2(%arg0: i32, %arg1: i32) -> (i32, i32, i32) {
    %c0_i32 = arith.constant 0 : i32
    %c0_i32_0 = arith.constant 0 : i32
    %c0_i32_1 = arith.constant 0 : i32
    return %arg0, %c0_i32, %c0_i32_0 : i32, i32, i32
  }
}

</mosaic_0001>

<llo_original>
// kernel: tpu_custom_call.1
$region0: #{tpu_custom_call.1}
  #allocation0 [shape = 'u32[]', space=smem, size = 0x4, offset = 0x4, fixed_abs, tag = 'smem constant byte address 0x4 - core index']
  #allocation1 [shape = 'u32[144,128]{1,0:T(1,128)}', space=vmem, size = 0x12000, scoped, tag = 'internal scratch']
  %s0 = inlined_call_operand.hbm [shape: f32[2,16,16,64], index: 0, kind: input, shape index: {}]
  %s1 = inlined_call_operand.hbm [shape: f32[2,1,64], index: 1, kind: output, shape index: {0}]
  %s2 = inlined_call_operand.hbm [shape: f32[2,1,64], index: 2, kind: output, shape index: {1}]
  %3 = xla_tuple %s1, %s2
  %s4 = sld [smem:[#allocation0]]
  $region53: #{tpu_custom_call.1} parent=0
    _
  %s6 = ssub.s32 1, %s4
  %s7 = scalar_select 0, %s6, %s4
  $region1: #{tpu_custom_call.1} parent=0
    #allocation2 [shape = 'u8[131072]{0}', space=vmem, size = 0x20000, scoped, tag = 'input window, operand 0']
    #allocation3 [shape = 's32[2]{0}', space=sflag, size = 0x8, scoped, tag = 'scoped memory for tpu_custom_call.1']
    #allocation4 [shape = 's32[2]{0}', space=sflag, size = 0x8, scoped, tag = 'scoped memory for tpu_custom_call.1']
    #allocation5 [shape = 'u8[1024]{0}', space=vmem, size = 0x400, scoped, tag = 'output window, operand 0']
    #allocation6 [shape = 'u8[1024]{0}', space=vmem, size = 0x400, scoped, tag = 'output window, operand 1']
    #allocation7 [shape = 's32[2]{0}', space=sflag, size = 0x8, scoped, tag = 'scoped memory for tpu_custom_call.1']
    %8 = vsyncpa [#allocation3], 0
    %s9 = scalar_lea.sflag [#allocation3], 1
    %10 = vsyncpa %s9, 0
    %11 = vsyncpa [#allocation4], 0
    %s12 = scalar_lea.sflag [#allocation4], 1
    %13 = vsyncpa %s12, 0
    %14 = vsyncpa [#allocation7], 0
    %s15 = scalar_lea.sflag [#allocation7], 1
    %16 = vsyncpa %s15, 0
    loop: start=0, step=1, limit=6
    $region2: #{tpu_custom_call.1} parent=1 // loop_pre_header
      _
    $region3: #{tpu_custom_call.1} parent=1 // loop_header
      %s18 = sphi 0, %s22
      %p19 = scmp.ge.s32.totalorder %s18, 6
      %s25 = sphi 0, %s37
      %s26 = sphi 0, %s33
      %s27 = sphi 0, %s25
      %s28 = sphi 0, %s26
      %s29 = sphi 0, %s27
      %s30 = sphi 0, %s28
      %s42 = sphi 0, %s44
      %s45 = sphi 0, %s42
      %s46 = sphi 0, %s45
      %s62 = sphi 0, %s46
      %s68 = sphi 0, %s70
      %s71 = sphi 0, %s68
      %s72 = sphi 0, %s71
      %s88 = sphi 0, %s72
      %s94 = sphi 0, %s96
      %s97 = sphi 0, %s94
      %s98 = sphi 0, %s97
      %s114 = sphi 0, %s98
    $region4: #{tpu_custom_call.1} parent=1 // loop_header_branch
      %21 = sbr.rel (%p19) target = $region8
    $region5: #{tpu_custom_call.1} parent=1 // loop_body
      %s23 = ssub.s32 %s18, 1
      %s24 = ssub.s32 %s18, 2
      %s31 = sadd.s32 1, %s26
      %p32 = scmp.ge.s32.totalorder %s31, 2
      %s33 = scalar_select %p32, 0, %s31
      %s34 = sadd.s32 1, %s25
      %s35 = scalar_select %p32, %s34, %s25
      %p36 = scmp.ge.s32.totalorder %s35, 2
      %s37 = scalar_select %p36, 0, %s35
      %s38 = ssub.s32 %s25, %s37
      %s39 = ssub.s32 %s26, %s33
      %s40 = sor.u32 %s38, %s39
      %p41 = scmp.eq.s32.totalorder %s40, 0
      %s43 = sadd.s32 %s42, 1
      %s44 = scalar_select %p41, %s42, %s43
      %p47 = pneg %p41
      %p48 = scmp.eq.s32.totalorder %s18, 3
      %p49 = por %p47, %p48
      %p50 = scmp.ne.s32.totalorder %s42, %s45
      %p51 = scmp.eq.s32.totalorder %s18, 0
      %p52 = por %p50, %p51
      %p53 = scmp.ne.s32.totalorder %s42, %s45
      %p54 = scmp.eq.s32.totalorder %s23, 3
      %p55 = por %p53, %p54
      %p56 = scmp.ne.s32.totalorder %s45, %s46
      %p57 = scmp.eq.s32.totalorder %s23, 0
      %p58 = por %p56, %p57
      %p59 = scmp.ne.s32.totalorder %s45, %s46
      %p60 = scmp.eq.s32.totalorder %s24, 3
      %p61 = por %p59, %p60
      %p63 = scmp.ne.s32.totalorder %s46, %s62
      %p64 = scmp.eq.s32.totalorder %s24, 0
      %p65 = por %p63, %p64
      %s66 = ssub.s32 %s25, %s37
      %p67 = scmp.eq.s32.totalorder %s66, 0
      %s69 = sadd.s32 %s68, 1
      %s70 = scalar_select %p67, %s68, %s69
      %p73 = pneg %p67
      %p74 = scmp.eq.s32.totalorder %s18, 3
      %p75 = por %p73, %p74
      %p76 = scmp.ne.s32.totalorder %s68, %s71
      %p77 = scmp.eq.s32.totalorder %s18, 0
      %p78 = por %p76, %p77
      %p79 = scmp.ne.s32.totalorder %s68, %s71
      %p80 = scmp.eq.s32.totalorder %s23, 3
      %p81 = por %p79, %p80
      %p82 = scmp.ne.s32.totalorder %s71, %s72
      %p83 = scmp.eq.s32.totalorder %s23, 0
      %p84 = por %p82, %p83
      %p85 = scmp.ne.s32.totalorder %s71, %s72
      %p86 = scmp.eq.s32.totalorder %s24, 3
      %p87 = por %p85, %p86
      %p89 = scmp.ne.s32.totalorder %s72, %s88
      %p90 = scmp.eq.s32.totalorder %s24, 0
      %p91 = por %p89, %p90
      %s92 = ssub.s32 %s25, %s37
      %p93 = scmp.eq.s32.totalorder %s92, 0
      %s95 = sadd.s32 %s94, 1
      %s96 = scalar_select %p93, %s94, %s95
      %p99 = pneg %p93
      %p100 = scmp.eq.s32.totalorder %s18, 3
      %p101 = por %p99, %p100
      %p102 = scmp.ne.s32.totalorder %s94, %s97
      %p103 = scmp.eq.s32.totalorder %s18, 0
      %p104 = por %p102, %p103
      %p105 = scmp.ne.s32.totalorder %s94, %s97
      %p106 = scmp.eq.s32.totalorder %s23, 3
      %p107 = por %p105, %p106
      %p108 = scmp.ne.s32.totalorder %s97, %s98
      %p109 = scmp.eq.s32.totalorder %s23, 0
      %p110 = por %p108, %p109
      %p111 = scmp.ne.s32.totalorder %s97, %s98
      %p112 = scmp.eq.s32.totalorder %s24, 3
      %p113 = por %p111, %p112
      %p115 = scmp.ne.s32.totalorder %s98, %s114
      %p116 = scmp.eq.s32.totalorder %s24, 0
      %p117 = por %p115, %p116
      %p118 = scmp.le.s32.totalorder 1, %s18
      %p119 = scmp.lt.s32.totalorder %s18, 5
      %p120 = pnand %p118, %p119
      %p121 = pneg %p120
      // Predicated region
      $region9: #{tpu_custom_call.1} parent=5 // pred_check
        _
      $region10: #{tpu_custom_call.1} parent=5 // pred_check_branch
        %123 = sbr.rel (%p120) target = $region12
      $region11: #{tpu_custom_call.1} parent=5 // pred_region
        %s124 = ssub.s32 %s18, 1
      $region12: #{tpu_custom_call.1} parent=5 // pred_fallthru
        _
      %p125 = scmp.lt.s32.totalorder %s18, 4
      // Predicated region
      $region13: #{tpu_custom_call.1} parent=5 // pred_check
        %p126 = pneg %p125
      $region14: #{tpu_custom_call.1} parent=5 // pred_check_branch
        %128 = sbr.rel (%p126) target = $region16
      $region15: #{tpu_custom_call.1} parent=5 // pred_region
        // Predicated region
        $region17: #{tpu_custom_call.1} parent=15 // pred_check
          %p129 = pneg %p52
        $region18: #{tpu_custom_call.1} parent=15 // pred_check_branch
          %131 = sbr.rel (%p129) target = $region20
        $region19: #{tpu_custom_call.1} parent=15 // pred_region
          %s132 = sand.u32 %s42, 1
          %s133 = scalar_lea.sflag [#allocation3], %s132
          %s134 = sand.u32 %s42, 1
          %s135 = smul.addr %s134, 128
          %s136 = scalar_lea.vmem [#allocation2], %s135
          %s137 = smul.u32 8, %s26
          %s139 = ssub.s32 2048, 2048
          %140 = vsyncadd %s133, %s139
          %s141 = smul.addr %s137, 2
          %s142 = smul.addr %s25, 32
          %s143 = sadd.s32 %s141, %s142
          %s144 = smul.addr %s143, 128
          %s145 = scalar_lea.hbm %s0, %s144
          %s146 = sshll.u32 %s136, 4
          %s147 = int_to_ptr.vmem [resolvable:$true] %s146
          %152 = dma.hbm_to_vmem [thread:$0]  %s145, 2048, %s147, %s133, 128, 128, 8
        $region20: #{tpu_custom_call.1} parent=15 // pred_fallthru
          _
      $region16: #{tpu_custom_call.1} parent=5 // pred_fallthru
        _
      %p153 = scmp.le.s32.totalorder 1, %s18
      %p154 = scmp.lt.s32.totalorder %s18, 5
      %p155 = pnand %p153, %p154
      %p156 = pneg %p155
      // Predicated region
      $region21: #{tpu_custom_call.1} parent=5 // pred_check
        _
      $region22: #{tpu_custom_call.1} parent=5 // pred_check_branch
        %158 = sbr.rel (%p155) target = $region24
      $region23: #{tpu_custom_call.1} parent=5 // pred_region
        %s159 = ssub.s32 %s18, 1
        %s160 = sand.u32 %s45, 1
        %s161 = scalar_lea.sflag [#allocation3], %s160
        %s162 = sand.u32 %s45, 1
        %s163 = smul.addr %s162, 128
        %s164 = scalar_lea.vmem [#allocation2], %s163
        // Predicated region
        $region25: #{tpu_custom_call.1} parent=23 // pred_check
          %p165 = pneg %p58
        $region26: #{tpu_custom_call.1} parent=23 // pred_check_branch
          %167 = sbr.rel (%p165) target = $region28
        $region27: #{tpu_custom_call.1} parent=23 // pred_region
          %168 = dma.done %s161, 2048
        $region28: #{tpu_custom_call.1} parent=23 // pred_fallthru
          _
        %s169 = sand.u32 %s45, 1
        %s170 = scalar_lea.sflag [#allocation3], %s169
        %s171 = sand.u32 %s45, 1
        %s172 = smul.addr %s171, 128
        %s173 = scalar_lea.vmem [#allocation2], %s172
        %p174 = pneg %p58
        %p175 = pneg %p55
        %p176 = pneg %p84
        %p177 = pneg %p81
        %s178 = sand.u32 %s71, 1
        %s179 = scalar_lea.sflag [#allocation4], %s178
        %s180 = sand.u32 %s71, 1
        %s181 = scalar_lea.vmem [#allocation5], %s180
        %p182 = pneg %p110
        %p183 = pneg %p107
        %s184 = sand.u32 %s97, 1
        %s185 = scalar_lea.sflag [#allocation7], %s184
        %s186 = sand.u32 %s97, 1
        %s187 = scalar_lea.vmem [#allocation6], %s186
        %s188 = smul.u32 8, %s28
        %p189 = scmp.eq.s32.totalorder %s28, 0
        // Predicated region
        $region29: #{tpu_custom_call.1} parent=23 // pred_check
          %p190 = pneg %p189
        $region30: #{tpu_custom_call.1} parent=23 // pred_check_branch
          %192 = sbr.rel (%p190) target = $region32
        $region31: #{tpu_custom_call.1} parent=23 // pred_region
          %vm193 = vcmask 516096
          %194 = vst.msk [vmem:[%s181] sm:$0x1] %vm193, 0.0
          %195 = vst.msk [vmem:[%s187] sm:$0x1] %vm193, 0.0
        $region32: #{tpu_custom_call.1} parent=23 // pred_fallthru
          _
        %v196 = vld [vmem:[%s164] sm:$0xff]
        %v197 = vld [vmem:[%s164 + $0x8] sm:$0xff]
        %v198 = vld [vmem:[%s164 + $0x10] sm:$0xff]
        %v199 = vld [vmem:[%s164 + $0x18] sm:$0xff]
        %v200 = vld [vmem:[%s164 + $0x20] sm:$0xff]
        %v201 = vld [vmem:[%s164 + $0x28] sm:$0xff]
        %v202 = vld [vmem:[%s164 + $0x30] sm:$0xff]
        %v203 = vld [vmem:[%s164 + $0x38] sm:$0xff]
        %v204 = vld [vmem:[%s164 + $0x40] sm:$0xff]
        %v205 = vld [vmem:[%s164 + $0x48] sm:$0xff]
        %v206 = vld [vmem:[%s164 + $0x50] sm:$0xff]
        %v207 = vld [vmem:[%s164 + $0x58] sm:$0xff]
        %v208 = vld [vmem:[%s164 + $0x60] sm:$0xff]
        %v209 = vld [vmem:[%s164 + $0x68] sm:$0xff]
        %v210 = vld [vmem:[%s164 + $0x70] sm:$0xff]
        %v211 = vld [vmem:[%s164 + $0x78] sm:$0xff]
        %v212 = vld [vmem:[%s181] sm:$0x1]
        %vm213 = vcmask 523264
        %v214 = vsel %vm213, %v196, 0.0
        %v215 = vsel %vm213, %v197, 0.0
        %v216 = vadd.f32 %v214, %v215
        %v217 = vsel %vm213, %v198, 0.0
        %v218 = vadd.f32 %v216, %v217
        %v219 = vsel %vm213, %v199, 0.0
        %v220 = vadd.f32 %v218, %v219
        %v221 = vsel %vm213, %v200, 0.0
        %v222 = vadd.f32 %v220, %v221
        %v223 = vsel %vm213, %v201, 0.0
        %v224 = vadd.f32 %v222, %v223
        %v225 = vsel %vm213, %v202, 0.0
        %v226 = vadd.f32 %v224, %v225
        %v227 = vsel %vm213, %v203, 0.0
        %v228 = vadd.f32 %v226, %v227
        %v229 = vsel %vm213, %v204, 0.0
        %v230 = vadd.f32 %v228, %v229
        %v231 = vsel %vm213, %v205, 0.0
        %v232 = vadd.f32 %v230, %v231
        %v233 = vsel %vm213, %v206, 0.0
        %v234 = vadd.f32 %v232, %v233
        %v235 = vsel %vm213, %v207, 0.0
        %v236 = vadd.f32 %v234, %v235
        %v237 = vsel %vm213, %v208, 0.0
        %v238 = vadd.f32 %v236, %v237
        %v239 = vsel %vm213, %v209, 0.0
        %v240 = vadd.f32 %v238, %v239
        %v241 = vsel %vm213, %v210, 0.0
        %v242 = vadd.f32 %v240, %v241
        %v243 = vsel %vm213, %v211, 0.0
        %v244 = vadd.f32 %v242, %v243
        %v245 = vrot.slane %v244, 4
        %v246 = vadd.f32 %v244, %v245
        %v247 = vrot.slane %v246, 2
        %v248 = vadd.f32 %v246, %v247
        %v249 = vrot.slane %v248, 1
        %v250 = vadd.f32 %v248, %v249
        %v251 = vadd.f32 %v212, %v250
        %vm252 = vcmask 516096
        %253 = vst.msk [vmem:[%s181] sm:$0x1] %vm252, %v251
        %v254 = vld [vmem:[%s187] sm:$0x1]
        %v255 = vmul.f32 %v196, %v196
        %v256 = vmul.f32 %v197, %v197
        %v257 = vmul.f32 %v198, %v198
        %v258 = vmul.f32 %v199, %v199
        %v259 = vmul.f32 %v200, %v200
        %v260 = vmul.f32 %v201, %v201
        %v261 = vmul.f32 %v202, %v202
        %v262 = vmul.f32 %v203, %v203
        %v263 = vmul.f32 %v204, %v204
        %v264 = vmul.f32 %v205, %v205
        %v265 = vmul.f32 %v206, %v206
        %v266 = vmul.f32 %v207, %v207
        %v267 = vmul.f32 %v208, %v208
        %v268 = vmul.f32 %v209, %v209
        %v269 = vmul.f32 %v210, %v210
        %v270 = vmul.f32 %v211, %v211
        %v271 = vsel %vm213, %v255, 0.0
        %v272 = vsel %vm213, %v256, 0.0
        %v273 = vadd.f32 %v271, %v272
        %v274 = vsel %vm213, %v257, 0.0
        %v275 = vadd.f32 %v273, %v274
        %v276 = vsel %vm213, %v258, 0.0
        %v277 = vadd.f32 %v275, %v276
        %v278 = vsel %vm213, %v259, 0.0
        %v279 = vadd.f32 %v277, %v278
        %v280 = vsel %vm213, %v260, 0.0
        %v281 = vadd.f32 %v279, %v280
        %v282 = vsel %vm213, %v261, 0.0
        %v283 = vadd.f32 %v281, %v282
        %v284 = vsel %vm213, %v262, 0.0
        %v285 = vadd.f32 %v283, %v284
        %v286 = vsel %vm213, %v263, 0.0
        %v287 = vadd.f32 %v285, %v286
        %v288 = vsel %vm213, %v264, 0.0
        %v289 = vadd.f32 %v287, %v288
        %v290 = vsel %vm213, %v265, 0.0
        %v291 = vadd.f32 %v289, %v290
        %v292 = vsel %vm213, %v266, 0.0
        %v293 = vadd.f32 %v291, %v292
        %v294 = vsel %vm213, %v267, 0.0
        %v295 = vadd.f32 %v293, %v294
        %v296 = vsel %vm213, %v268, 0.0
        %v297 = vadd.f32 %v295, %v296
        %v298 = vsel %vm213, %v269, 0.0
        %v299 = vadd.f32 %v297, %v298
        %v300 = vsel %vm213, %v270, 0.0
        %v301 = vadd.f32 %v299, %v300
        %v302 = vrot.slane %v301, 4
        %v303 = vadd.f32 %v301, %v302
        %v304 = vrot.slane %v303, 2
        %v305 = vadd.f32 %v303, %v304
        %v306 = vrot.slane %v305, 1
        %v307 = vadd.f32 %v305, %v306
        %v308 = vadd.f32 %v254, %v307
        %309 = vst.msk [vmem:[%s187] sm:$0x1] %vm252, %v308
        %s310 = sand.u32 %s71, 1
        %s311 = scalar_lea.sflag [#allocation4], %s310
        %s312 = sand.u32 %s71, 1
        %s313 = scalar_lea.vmem [#allocation5], %s312
        %s314 = sand.u32 %s97, 1
        %s315 = scalar_lea.sflag [#allocation7], %s314
        %s316 = sand.u32 %s97, 1
        %s317 = scalar_lea.vmem [#allocation6], %s316
        // Predicated region
        $region33: #{tpu_custom_call.1} parent=23 // pred_check
          %p318 = pneg %p81
        $region34: #{tpu_custom_call.1} parent=23 // pred_check_branch
          %320 = sbr.rel (%p318) target = $region36
        $region35: #{tpu_custom_call.1} parent=23 // pred_region
          %s322 = ssub.s32 16, 16
          %323 = vsyncadd %s311, %s322
          %s324 = smul.addr %s27, 16
          %s325 = scalar_lea.hbm %s1, %s324
          %s327 = sshll.u32 %s313, 4
          %s328 = int_to_ptr.vmem [resolvable:$true] %s327
          %330 = dma.vmem_to_hbm [thread:$0]  %s328, 16, %s325, %s311
        $region36: #{tpu_custom_call.1} parent=23 // pred_fallthru
          _
        // Predicated region
        $region37: #{tpu_custom_call.1} parent=23 // pred_check
          %p331 = pneg %p107
        $region38: #{tpu_custom_call.1} parent=23 // pred_check_branch
          %333 = sbr.rel (%p331) target = $region40
        $region39: #{tpu_custom_call.1} parent=23 // pred_region
          %s335 = ssub.s32 16, 16
          %336 = vsyncadd %s315, %s335
          %s337 = smul.addr %s27, 16
          %s338 = scalar_lea.hbm %s2, %s337
          %s340 = sshll.u32 %s317, 4
          %s341 = int_to_ptr.vmem [resolvable:$true] %s340
          %343 = dma.vmem_to_hbm [thread:$0]  %s341, 16, %s338, %s315
        $region40: #{tpu_custom_call.1} parent=23 // pred_fallthru
          _
      $region24: #{tpu_custom_call.1} parent=5 // pred_fallthru
        _
      %p344 = scmp.le.s32.totalorder 2, %s18
      // Predicated region
      $region41: #{tpu_custom_call.1} parent=5 // pred_check
        %p345 = pneg %p344
      $region42: #{tpu_custom_call.1} parent=5 // pred_check_branch
        %347 = sbr.rel (%p345) target = $region44
      $region43: #{tpu_custom_call.1} parent=5 // pred_region
        %s348 = ssub.s32 %s18, 2
        // Predicated region
        $region45: #{tpu_custom_call.1} parent=43 // pred_check
          %p349 = pneg %p87
        $region46: #{tpu_custom_call.1} parent=43 // pred_check_branch
          %351 = sbr.rel (%p349) target = $region48
        $region47: #{tpu_custom_call.1} parent=43 // pred_region
          %s352 = sand.u32 %s72, 1
          %s353 = scalar_lea.sflag [#allocation4], %s352
          %s354 = sand.u32 %s72, 1
          %s355 = scalar_lea.vmem [#allocation5], %s354
          %356 = dma.done %s353, 16
        $region48: #{tpu_custom_call.1} parent=43 // pred_fallthru
          _
        // Predicated region
        $region49: #{tpu_custom_call.1} parent=43 // pred_check
          %p357 = pneg %p113
        $region50: #{tpu_custom_call.1} parent=43 // pred_check_branch
          %359 = sbr.rel (%p357) target = $region52
        $region51: #{tpu_custom_call.1} parent=43 // pred_region
          %s360 = sand.u32 %s98, 1
          %s361 = scalar_lea.sflag [#allocation7], %s360
          %s362 = sand.u32 %s98, 1
          %s363 = scalar_lea.vmem [#allocation6], %s362
          %364 = dma.done %s361, 16
        $region52: #{tpu_custom_call.1} parent=43 // pred_fallthru
          _
      $region44: #{tpu_custom_call.1} parent=5 // pred_fallthru
        _
    $region6: #{tpu_custom_call.1} parent=1 // loop_footer
      %s22 = sadd.s32 1, %s18
    $region7: #{tpu_custom_call.1} parent=1 // loop_footer_branch
      %17 = sbr.rel target = $region3
    $region8: #{tpu_custom_call.1} parent=1 // loop_exit
      _
    %365 = vsyncpa [#allocation3], 1
    %s366 = scalar_lea.sflag [#allocation3], 1
    %367 = vsyncpa %s366, 1
    %368 = vsyncpa [#allocation4], 1
    %s369 = scalar_lea.sflag [#allocation4], 1
    %370 = vsyncpa %s369, 1
    %371 = vsyncpa [#allocation7], 1
    %s372 = scalar_lea.sflag [#allocation7], 1
    %373 = vsyncpa %s372, 1

</llo_original>
